<compile_context>
chip_gen: v7x
topology: tpu7x:2x2x1
jax: 0.10.0
libtpu: 0.0.40
codegen_flags: <defaults>
</compile_context>

<pallas_src>
import jax
import jax.numpy as jnp
from jax.experimental import pallas as pl
from jax.experimental.pallas import tpu as pltpu


def _round_up(n: int, m: int) -> int:
    return ((n + m - 1) // m) * m


def _mlp_kernel(x_ref, w1_ref, b1_ref, w2_ref, b2_ref, o_ref, h_ref):
    # Grid = (row_tiles, vocab_tiles); vocab (axis 1) is inner + "arbitrary".
    # x_ref:  (tm, D)   row tile of flattened (padded) tokens, MXU dtype
    # w1_ref: (D, D)    full W1 (MXU dtype), single-buffered resident
    # b1_ref: (1, D)    f32 bias
    # w2_ref: (D, tv)   vocab tile of W2 (MXU dtype)
    # b2_ref: (1, tv)   f32 bias tile
    # o_ref:  (tm, tv)  lane-dense output tile
    # h_ref:  (tm, D)   VMEM scratch: cached ReLU(x@W1+b1), MXU dtype
    @pl.when(pl.program_id(1) == 0)
    def _():
        h = jnp.dot(x_ref[...], w1_ref[...], preferred_element_type=jnp.float32)
        h = jnp.maximum(h + b1_ref[...], 0.0)          # bias + ReLU in f32 (v5e-safe)
        h_ref[...] = h.astype(h_ref.dtype)             # cached in MXU dtype

    y = jnp.dot(h_ref[...], w2_ref[...], preferred_element_type=jnp.float32)
    o_ref[...] = (y + b2_ref[...]).astype(o_ref.dtype)


_BUFFERED_ONE_OK = None  # probed once: does this jax accept pl.Buffered(1)?


def _vmem_capacity_bytes():
    try:
        return int(pltpu.get_tpu_info().vmem_capacity_bytes)
    except Exception:
        return None


def _build_call(M_pad, V_pad, D, tm, tv, mxu_dtype, out_dtype,
                single_buffer_weights, vmem_limit):
    def resident(shape):
        # Constant index_map -> fetched once; single-buffer it if supported.
        if single_buffer_weights:
            return pl.BlockSpec(shape, lambda i, j: (0, 0),
                                pipeline_mode=pl.Buffered(1))
        return pl.BlockSpec(shape, lambda i, j: (0, 0))

    grid = (M_pad // tm, V_pad // tv)
    return pl.pallas_call(
        _mlp_kernel,
        out_shape=jax.ShapeDtypeStruct((M_pad, V_pad), out_dtype),
        grid_spec=pltpu.PrefetchScalarGridSpec(
            num_scalar_prefetch=0,
            grid=grid,
            in_specs=[
                pl.BlockSpec((tm, D), lambda i, j: (i, 0)),   # x row tile
                resident((D, D)),                             # W1 (full, resident)
                resident((1, D)),                             # b1
                pl.BlockSpec((D, tv), lambda i, j: (0, j)),   # W2 vocab tile
                pl.BlockSpec((1, tv), lambda i, j: (0, j)),   # b2 vocab tile
            ],
            out_specs=pl.BlockSpec((tm, tv), lambda i, j: (i, j)),
            scratch_shapes=[pltpu.VMEM((tm, D), mxu_dtype)],  # cached activation h
        ),
        compiler_params=pltpu.CompilerParams(
            # Row axis parallel (megacore-shardable on v7x's 2 TCs); vocab axis
            # must be "arbitrary" because h scratch is carried across it.
            dimension_semantics=("parallel", "arbitrary"),
            vmem_limit_bytes=vmem_limit,
        ),
    )


def token_classification_forward(x, w1, b1, w2, b2, *, tm=None, tv=None,
                                 mxu_dtype=jnp.float32, out_dtype=None):
    """x: (B, S, D). Returns logits (B, S, V).

    tm:        row tile (tokens per step). Default: generation-aware, <= 512
               (<= 256 when VMEM capacity <= 64 MiB, i.e. v7x), and >= 2 row
               tiles when M allows so both v7x TensorCores get work.
    tv:        vocab tile (multiple of 128). Default: <= 2048 (<= 1024 on v7x).
    mxu_dtype: dtype fed to the MXU. bfloat16 is recommended on ALL generations
               (v5e's MXU runs bf16 at full 197 TF/s and it halves weight DMA;
               bias + ReLU stay f32 here). Default f32 preserves exact
               PyTorch-module semantics.
    out_dtype: logits dtype (default: x.dtype). bf16 halves the (M, V) writeback.
    """
    global _BUFFERED_ONE_OK

    out_dtype = x.dtype if out_dtype is None else out_dtype
    B, S, D = x.shape
    assert w1.shape == (D, D)
    V = w2.shape[1]
    M = B * S

    mxu_bytes = jnp.dtype(mxu_dtype).itemsize
    out_bytes = jnp.dtype(out_dtype).itemsize
    row_align = 16 if mxu_bytes < 4 else 8          # sub-32-bit packs 2 rows/sublane

    cap = _vmem_capacity_bytes()
    small_vmem = cap is not None and cap <= (64 << 20)   # v7x: 64 MiB per TC

    # ---- row tiling: big tiles, >=2 parallel tiles when M allows -------------
    if tm is None:
        tm_cap = 256 if small_vmem else 512
        if M <= tm_cap:
            tm = _round_up(M, row_align)
        else:
            tm = min(tm_cap, _round_up(-(-M // 2), row_align))
    tm = _round_up(min(tm, _round_up(M, row_align)), row_align)
    M_pad = _round_up(M, tm)

    # ---- vocab tiling: lane-dense (multiple of 128) ---------------------------
    V_pad = _round_up(V, 128)
    if tv is None:
        tv = min(V_pad, 1024 if small_vmem else 2048)
    tv = min(_round_up(tv, 128), V_pad)
    V_pad = _round_up(V_pad, tv)

    # ---- wrapper-side padding / dtype plumbing --------------------------------
    x2d = x.reshape(M, D)
    if M_pad != M:
        x2d = jnp.pad(x2d, ((0, M_pad - M), (0, 0)))
    w2p, b2p = w2, b2
    if V_pad != V:
        w2p = jnp.pad(w2p, ((0, 0), (0, V_pad - V)))
        b2p = jnp.pad(b2p, (0, V_pad - V))

    x2d = x2d.astype(mxu_dtype)
    w1c = w1.astype(mxu_dtype)
    w2c = w2p.astype(mxu_dtype)
    b1_2d = b1.reshape(1, D).astype(jnp.float32)
    b2_2d = b2p.reshape(1, V_pad).astype(jnp.float32)

    # ---- VMEM budget sized from the actual tile footprint ---------------------
    def _limit(w1_bufs):
        fp = 2 * tm * D * mxu_bytes                      # x tiles (double-buffered)
        fp += w1_bufs * (D * D * mxu_bytes + D * 4)      # W1 + b1
        fp += 2 * (D * tv * mxu_bytes + tv * 4)          # W2 + b2 tiles
        fp += 2 * tm * tv * out_bytes                    # output tiles
        fp += tm * D * mxu_bytes                         # h scratch
        fp = int(fp * 1.3) + (4 << 20)                   # compiler scratch / slack
        fp = max(fp, 32 << 20)
        hard_cap = int(cap * 0.9) if cap else (100 << 20)
        return min(fp, hard_cap)

    # ---- call (probe pl.Buffered(1) once; fall back to default buffering) -----
    tries = [True, False] if _BUFFERED_ONE_OK is None else [_BUFFERED_ONE_OK]
    out2d = None
    last_err = None
    for single_buf in tries:
        try:
            call = _build_call(M_pad, V_pad, D, tm, tv, mxu_dtype, out_dtype,
                               single_buf, _limit(1 if single_buf else 2))
            out2d = call(x2d, w1c, b1_2d, w2c, b2_2d)
            _BUFFERED_ONE_OK = single_buf
            break
        except Exception as e:   # e.g. Buffered(1) unsupported by this jax build
            last_err = e
    if out2d is None:
        raise last_err

    return out2d[:M, :V].reshape(B, S, V)


if __name__ == "__main__":
    # Shapes consistent with the module: decoder_d_model=32, vocab_size=64,
    # batch=2, seq=8.
    B, S, D, V = 2, 8, 32, 64

    key = jax.random.PRNGKey(0)
    k_x, k_w1, k_b1, k_w2, k_b2 = jax.random.split(key, 5)

    x = jax.random.normal(k_x, (B, S, D), dtype=jnp.float32)
    lim = 1.0 / (D ** 0.5)
    w1 = jax.random.uniform(k_w1, (D, D), jnp.float32, -lim, lim)
    b1 = jax.random.uniform(k_b1, (D,), jnp.float32, -lim, lim)
    w2 = jax.random.uniform(k_w2, (D, V), jnp.float32, -lim, lim)
    b2 = jax.random.uniform(k_b2, (V,), jnp.float32, -lim, lim)

    # Reference (same math as the PyTorch forward), highest-precision matmuls.
    hp = jax.lax.Precision.HIGHEST
    ref = jnp.dot(jnp.maximum(jnp.dot(x, w1, precision=hp) + b1, 0.0),
                  w2, precision=hp) + b2

    # Default (f32 MXU) path.
    out = token_classification_forward(x, w1, b1, w2, b2)
    out = jax.block_until_ready(out)
    assert out.shape == (B, S, V)
    assert jnp.allclose(out, ref, atol=2e-2, rtol=2e-2)

    # bf16 MXU operand path (perf config for all generations) — looser tolerance.
    out_bf16 = token_classification_forward(x, w1, b1, w2, b2,
                                            mxu_dtype=jnp.bfloat16)
    out_bf16 = jax.block_until_ready(out_bf16)
    assert out_bf16.shape == (B, S, V)
    assert jnp.allclose(out_bf16, ref, atol=5e-2, rtol=5e-2)

    # Multi-tile path: several vocab tiles and row tiles to exercise the
    # h-caching (pl.when(j==0)) + scratch-carry logic at small scale.
    V2 = 320
    k_w2b, k_b2b = jax.random.split(k_w2)
    w2b = jax.random.uniform(k_w2b, (D, V2), jnp.float32, -lim, lim)
    b2b = jax.random.uniform(k_b2b, (V2,), jnp.float32, -lim, lim)
    ref2 = jnp.dot(jnp.maximum(jnp.dot(x, w1, precision=hp) + b1, 0.0),
                   w2b, precision=hp) + b2b
    out2 = token_classification_forward(x, w1, b1, w2b, b2b, tm=8, tv=128)
    out2 = jax.block_until_ready(out2)
    assert out2.shape == (B, S, V2)
    assert jnp.allclose(out2, ref2, atol=2e-2, rtol=2e-2)

    print("KERNEL_OK")
</pallas_src>

<mosaic_0001>
module attributes {stable_mosaic.version = 11 : i64} {
  func.func @_mlp_kernel(%arg0: i32, %arg1: i32, %arg2: memref<16x32xf32, #tpu.memory_space<vmem>>, %arg3: memref<32x32xf32, #tpu.memory_space<vmem>>, %arg4: memref<1x32xf32, #tpu.memory_space<vmem>>, %arg5: memref<32x128xf32, #tpu.memory_space<vmem>>, %arg6: memref<1x128xf32, #tpu.memory_space<vmem>>, %arg7: memref<16x128xf32, #tpu.memory_space<vmem>>, %arg8: memref<16x32xf32, #tpu.memory_space<vmem>>) attributes {dimension_semantics = [#tpu.dimension_semantics<parallel>, #tpu.dimension_semantics<arbitrary>], iteration_bounds = array<i64: 1, 1>, scalar_prefetch = 0 : i64, scratch_operands = 1 : i64, tpu.core_type = #tpu.core_type<tc>, window_params = [{transform_indices = @transform_0, window_bounds = array<i64: 16, 32>}, {pipeline_mode = #tpu.pipeline_mode<synchronous>, transform_indices = @transform_1, window_bounds = array<i64: 32, 32>}, {pipeline_mode = #tpu.pipeline_mode<synchronous>, transform_indices = @transform_2, window_bounds = array<i64: 1, 32>}, {transform_indices = @transform_3, window_bounds = array<i64: 32, 128>}, {transform_indices = @transform_4, window_bounds = array<i64: 1, 128>}, {transform_indices = @transform_5, window_bounds = array<i64: 16, 128>}]} {
    %c0_i32 = arith.constant 0 : i32
    %0 = arith.cmpi eq, %arg1, %c0_i32 : i32
    %1 = arith.extui %0 : i1 to i32
    %c0_i32_0 = arith.constant 0 : i32
    %2 = arith.cmpi ne, %1, %c0_i32_0 : i32
    scf.if %2 {
      %c0_8 = arith.constant 0 : index
      %c0_9 = arith.constant 0 : index
      %10 = vector.load %arg2[%c0_8, %c0_9] : memref<16x32xf32, #tpu.memory_space<vmem>>, vector<16x32xf32>
      %c0_10 = arith.constant 0 : index
      %c0_11 = arith.constant 0 : index
      %11 = vector.load %arg3[%c0_10, %c0_11] : memref<32x32xf32, #tpu.memory_space<vmem>>, vector<32x32xf32>
      %cst_12 = arith.constant dense<0.000000e+00> : vector<16x32xf32>
      %12 = tpu.matmul %10, %11, %cst_12 {dimension_numbers = #tpu.dot_dimension_numbers<[1], [0], [0], [1], [0, 0, 1, 1], [], []>} : vector<16x32xf32>, vector<32x32xf32>, vector<16x32xf32> -> vector<16x32xf32>
      %c0_13 = arith.constant 0 : index
      %c0_14 = arith.constant 0 : index
      %13 = vector.load %arg4[%c0_13, %c0_14] : memref<1x32xf32, #tpu.memory_space<vmem>>, vector<1x32xf32>
      %14 = vector.broadcast %13 : vector<1x32xf32> to vector<16x32xf32>
      %15 = arith.addf %12, %14 : vector<16x32xf32>
      %cst_15 = arith.constant 0.000000e+00 : f32
      %16 = vector.broadcast %cst_15 : f32 to vector<16x32xf32>
      %17 = arith.maximumf %15, %16 : vector<16x32xf32>
      %c0_16 = arith.constant 0 : index
      %c0_17 = arith.constant 0 : index
      %18 = vector.load %arg8[%c0_16, %c0_17] : memref<16x32xf32, #tpu.memory_space<vmem>>, vector<16x32xf32>
      tpu.vector_store %arg8[%c0_16, %c0_17], %17 {strides = array<i32>} : memref<16x32xf32, #tpu.memory_space<vmem>>, vector<16x32xf32>,
    } else {
    }
    %c0 = arith.constant 0 : index
    %c0_1 = arith.constant 0 : index
    %3 = vector.load %arg8[%c0, %c0_1] : memref<16x32xf32, #tpu.memory_space<vmem>>, vector<16x32xf32>
    %c0_2 = arith.constant 0 : index
    %c0_3 = arith.constant 0 : index
    %4 = vector.load %arg5[%c0_2, %c0_3] : memref<32x128xf32, #tpu.memory_space<vmem>>, vector<32x128xf32>
    %cst = arith.constant dense<0.000000e+00> : vector<16x128xf32>
    %5 = tpu.matmul %3, %4, %cst {dimension_numbers = #tpu.dot_dimension_numbers<[1], [0], [0], [1], [0, 0, 1, 1], [], []>} : vector<16x32xf32>, vector<32x128xf32>, vector<16x128xf32> -> vector<16x128xf32>
    %c0_4 = arith.constant 0 : index
    %c0_5 = arith.constant 0 : index
    %6 = vector.load %arg6[%c0_4, %c0_5] : memref<1x128xf32, #tpu.memory_space<vmem>>, vector<1x128xf32>
    %7 = vector.broadcast %6 : vector<1x128xf32> to vector<16x128xf32>
    %8 = arith.addf %5, %7 : vector<16x128xf32>
    %c0_6 = arith.constant 0 : index
    %c0_7 = arith.constant 0 : index
    %9 = vector.load %arg7[%c0_6, %c0_7] : memref<16x128xf32, #tpu.memory_space<vmem>>, vector<16x128xf32>
    tpu.vector_store %arg7[%c0_6, %c0_7], %8 {strides = array<i32>} : memref<16x128xf32, #tpu.memory_space<vmem>>, vector<16x128xf32>,
    return
  }
  func.func @transform_0(%arg0: i32, %arg1: i32) -> (i32, i32) {
    %c0_i32 = arith.constant 0 : i32
    %c0_i32_0 = arith.constant 0 : i32
    return %arg0, %c0_i32 : i32, i32
  }
  func.func @transform_1(%arg0: i32, %arg1: i32) -> (i32, i32) {
    %c0_i32 = arith.constant 0 : i32
    %c0_i32_0 = arith.constant 0 : i32
    %c0_i32_1 = arith.constant 0 : i32
    return %c0_i32, %c0_i32_0 : i32, i32
  }
  func.func @transform_2(%arg0: i32, %arg1: i32) -> (i32, i32) {
    %c0_i32 = arith.constant 0 : i32
    %c0_i32_0 = arith.constant 0 : i32
    %c0_i32_1 = arith.constant 0 : i32
    return %c0_i32, %c0_i32_0 : i32, i32
  }
  func.func @transform_3(%arg0: i32, %arg1: i32) -> (i32, i32) {
    %c0_i32 = arith.constant 0 : i32
    %c0_i32_0 = arith.constant 0 : i32
    return %c0_i32, %arg1 : i32, i32
  }
  func.func @transform_4(%arg0: i32, %arg1: i32) -> (i32, i32) {
    %c0_i32 = arith.constant 0 : i32
    %c0_i32_0 = arith.constant 0 : i32
    return %c0_i32, %arg1 : i32, i32
  }
  func.func @transform_5(%arg0: i32, %arg1: i32) -> (i32, i32) {
    %c0_i32 = arith.constant 0 : i32
    return %arg0, %arg1 : i32, i32
  }
}

module attributes {stable_mosaic.version = 11 : i64} {
  func.func @_mlp_kernel(%arg0: i32, %arg1: i32, %arg2: memref<16x32xf32, #tpu.memory_space<vmem>>, %arg3: memref<32x32xf32, #tpu.memory_space<vmem>>, %arg4: memref<1x32xf32, #tpu.memory_space<vmem>>, %arg5: memref<32x128xf32, #tpu.memory_space<vmem>>, %arg6: memref<1x128xf32, #tpu.memory_space<vmem>>, %arg7: memref<16x128xf32, #tpu.memory_space<vmem>>, %arg8: memref<16x32xf32, #tpu.memory_space<vmem>>) attributes {dimension_semantics = [#tpu.dimension_semantics<parallel>, #tpu.dimension_semantics<arbitrary>], iteration_bounds = array<i64: 1, 1>, scalar_prefetch = 0 : i64, scratch_operands = 1 : i64, tpu.core_type = #tpu.core_type<tc>, window_params = [{transform_indices = @transform_0, window_bounds = array<i64: 16, 32>}, {pipeline_mode = #tpu.pipeline_mode<synchronous>, transform_indices = @transform_1, window_bounds = array<i64: 32, 32>}, {pipeline_mode = #tpu.pipeline_mode<synchronous>, transform_indices = @transform_2, window_bounds = array<i64: 1, 32>}, {transform_indices = @transform_3, window_bounds = array<i64: 32, 128>}, {transform_indices = @transform_4, window_bounds = array<i64: 1, 128>}, {transform_indices = @transform_5, window_bounds = array<i64: 16, 128>}]} {
    %c0_i32 = arith.constant 0 : i32
    %0 = arith.cmpi eq, %arg1, %c0_i32 : i32
    %1 = arith.extui %0 : i1 to i32
    %c0_i32_0 = arith.constant 0 : i32
    %2 = arith.cmpi ne, %1, %c0_i32_0 : i32
    scf.if %2 {
      %c0_8 = arith.constant 0 : index
      %c0_9 = arith.constant 0 : index
      %10 = vector.load %arg2[%c0_8, %c0_9] : memref<16x32xf32, #tpu.memory_space<vmem>>, vector<16x32xf32>
      %c0_10 = arith.constant 0 : index
      %c0_11 = arith.constant 0 : index
      %11 = vector.load %arg3[%c0_10, %c0_11] : memref<32x32xf32, #tpu.memory_space<vmem>>, vector<32x32xf32>
      %cst_12 = arith.constant dense<0.000000e+00> : vector<16x32xf32>
      %12 = tpu.matmul %10, %11, %cst_12 {dimension_numbers = #tpu.dot_dimension_numbers<[1], [0], [0], [1], [0, 0, 1, 1], [], []>} : vector<16x32xf32>, vector<32x32xf32>, vector<16x32xf32> -> vector<16x32xf32>
      %c0_13 = arith.constant 0 : index
      %c0_14 = arith.constant 0 : index
      %13 = vector.load %arg4[%c0_13, %c0_14] : memref<1x32xf32, #tpu.memory_space<vmem>>, vector<1x32xf32>
      %14 = vector.broadcast %13 : vector<1x32xf32> to vector<16x32xf32>
      %15 = arith.addf %12, %14 : vector<16x32xf32>
      %cst_15 = arith.constant 0.000000e+00 : f32
      %16 = vector.broadcast %cst_15 : f32 to vector<16x32xf32>
      %17 = arith.maximumf %15, %16 : vector<16x32xf32>
      %c0_16 = arith.constant 0 : index
      %c0_17 = arith.constant 0 : index
      %18 = vector.load %arg8[%c0_16, %c0_17] : memref<16x32xf32, #tpu.memory_space<vmem>>, vector<16x32xf32>
      tpu.vector_store %arg8[%c0_16, %c0_17], %17 {strides = array<i32>} : memref<16x32xf32, #tpu.memory_space<vmem>>, vector<16x32xf32>,
    } else {
    }
    %c0 = arith.constant 0 : index
    %c0_1 = arith.constant 0 : index
    %3 = vector.load %arg8[%c0, %c0_1] : memref<16x32xf32, #tpu.memory_space<vmem>>, vector<16x32xf32>
    %c0_2 = arith.constant 0 : index
    %c0_3 = arith.constant 0 : index
    %4 = vector.load %arg5[%c0_2, %c0_3] : memref<32x128xf32, #tpu.memory_space<vmem>>, vector<32x128xf32>
    %cst = arith.constant dense<0.000000e+00> : vector<16x128xf32>
    %5 = tpu.matmul %3, %4, %cst {dimension_numbers = #tpu.dot_dimension_numbers<[1], [0], [0], [1], [0, 0, 1, 1], [], []>} : vector<16x32xf32>, vector<32x128xf32>, vector<16x128xf32> -> vector<16x128xf32>
    %c0_4 = arith.constant 0 : index
    %c0_5 = arith.constant 0 : index
    %6 = vector.load %arg6[%c0_4, %c0_5] : memref<1x128xf32, #tpu.memory_space<vmem>>, vector<1x128xf32>
    %7 = vector.broadcast %6 : vector<1x128xf32> to vector<16x128xf32>
    %8 = arith.addf %5, %7 : vector<16x128xf32>
    %c0_6 = arith.constant 0 : index
    %c0_7 = arith.constant 0 : index
    %9 = vector.load %arg7[%c0_6, %c0_7] : memref<16x128xf32, #tpu.memory_space<vmem>>, vector<16x128xf32>
    tpu.vector_store %arg7[%c0_6, %c0_7], %8 {strides = array<i32>} : memref<16x128xf32, #tpu.memory_space<vmem>>, vector<16x128xf32>,
    return
  }
  func.func @transform_0(%arg0: i32, %arg1: i32) -> (i32, i32) {
    %c0_i32 = arith.constant 0 : i32
    %c0_i32_0 = arith.constant 0 : i32
    return %arg0, %c0_i32 : i32, i32
  }
  func.func @transform_1(%arg0: i32, %arg1: i32) -> (i32, i32) {
    %c0_i32 = arith.constant 0 : i32
    %c0_i32_0 = arith.constant 0 : i32
    %c0_i32_1 = arith.constant 0 : i32
    return %c0_i32, %c0_i32_0 : i32, i32
  }
  func.func @transform_2(%arg0: i32, %arg1: i32) -> (i32, i32) {
    %c0_i32 = arith.constant 0 : i32
    %c0_i32_0 = arith.constant 0 : i32
    %c0_i32_1 = arith.constant 0 : i32
    return %c0_i32, %c0_i32_0 : i32, i32
  }
  func.func @transform_3(%arg0: i32, %arg1: i32) -> (i32, i32) {
    %c0_i32 = arith.constant 0 : i32
    %c0_i32_0 = arith.constant 0 : i32
    return %c0_i32, %arg1 : i32, i32
  }
  func.func @transform_4(%arg0: i32, %arg1: i32) -> (i32, i32) {
    %c0_i32 = arith.constant 0 : i32
    %c0_i32_0 = arith.constant 0 : i32
    return %c0_i32, %arg1 : i32, i32
  }
  func.func @transform_5(%arg0: i32, %arg1: i32) -> (i32, i32) {
    %c0_i32 = arith.constant 0 : i32
    return %arg0, %arg1 : i32, i32
  }
}

</mosaic_0001>

<llo_original>
// kernel: tpu_custom_call.1
$region0: #{tpu_custom_call.1}
  #allocation0 [shape = 'u32[]', space=smem, size = 0x4, offset = 0x4, fixed_abs, tag = 'smem constant byte address 0x4 - core index']
  #allocation1 [shape = 'u32[144,128]{1,0:T(1,128)}', space=vmem, size = 0x12000, scoped, tag = 'internal scratch']
  #allocation2 [shape = 'f32[16,32]{1,0:T(8,128)}', space=vmem, size = 0x2000, scoped, tag = 'scratch operand']
  %s0 = inlined_call_operand.hbm [shape: f32[16,32], index: 0, kind: input, shape index: {}]
  %s1 = inlined_call_operand.hbm [shape: f32[32,32], index: 1, kind: input, shape index: {}]
  %s2 = inlined_call_operand.vmem [shape: f32[1,32], index: 2, kind: input, shape index: {}]
  %s3 = inlined_call_operand.hbm [shape: f32[32,128], index: 3, kind: input, shape index: {}]
  %s4 = inlined_call_operand.vmem [shape: f32[1,128], index: 4, kind: input, shape index: {}]
  %s5 = inlined_call_operand.hbm [shape: f32[16,128], index: 5, kind: output, shape index: {}]
  %s6 = sld [smem:[#allocation0]]
  $region46: #{tpu_custom_call.1} parent=0
    _
  %s8 = ssub.s32 1, %s6
  %s9 = scalar_select 0, %s8, %s6
  $region1: #{tpu_custom_call.1} parent=0
    #allocation3 [shape = 'u8[8192]{0}', space=vmem, size = 0x2000, scoped, tag = 'input window, operand 0, single buffered']
    #allocation4 [shape = 's32[1]{0}', space=sflag, size = 0x4, scoped, tag = 'scoped memory for tpu_custom_call.1']
    #allocation5 [shape = 's32[1]{0}', space=sflag, size = 0x4, scoped, tag = 'scoped memory for tpu_custom_call.1']
    #allocation6 [shape = 'u8[16384]{0}', space=vmem, size = 0x4000, scoped, tag = 'input window, operand 1, single buffered']
    #allocation7 [shape = 's32[1]{0}', space=sflag, size = 0x4, scoped, tag = 'scoped memory for tpu_custom_call.1']
    #allocation8 [shape = 'u8[16384]{0}', space=vmem, size = 0x4000, scoped, tag = 'input window, operand 3, single buffered']
    #allocation9 [shape = 'u8[8192]{0}', space=vmem, size = 0x2000, scoped, tag = 'output window, operand 0, single buffered']
    %10 = vsyncpa [#allocation4], 0
    %11 = vsyncpa [#allocation7], 0
    %12 = vsyncpa [#allocation5], 0
    // Predicated region
    $region2: #{tpu_custom_call.1} parent=1 // pred_check
      _
    $region3: #{tpu_custom_call.1} parent=1 // pred_check_branch
      %14 = sbr.rel (0) target = $region5
    $region4: #{tpu_custom_call.1} parent=1 // pred_region
      %s16 = ssub.s32 256, 256
      %17 = vsyncadd [#allocation4], %s16
      %s18 = sshll.u32 [#allocation3], 4
      %s19 = int_to_ptr.vmem [resolvable:$true] %s18
      %24 = dma.hbm_to_vmem [thread:$0]  %s0, 256, %s19, [#allocation4], 128, 128, 8
    $region5: #{tpu_custom_call.1} parent=1 // pred_fallthru
      _
    // Predicated region
    $region6: #{tpu_custom_call.1} parent=1 // pred_check
      _
    $region7: #{tpu_custom_call.1} parent=1 // pred_check_branch
      %26 = sbr.rel (0) target = $region9
    $region8: #{tpu_custom_call.1} parent=1 // pred_region
      %s28 = ssub.s32 512, 512
      %29 = vsyncadd [#allocation7], %s28
      %s30 = sshll.u32 [#allocation6], 4
      %s31 = int_to_ptr.vmem [resolvable:$true] %s30
      %36 = dma.hbm_to_vmem [thread:$0]  %s1, 512, %s31, [#allocation7], 128, 128, 8
    $region9: #{tpu_custom_call.1} parent=1 // pred_fallthru
      _
    // Predicated region
    $region10: #{tpu_custom_call.1} parent=1 // pred_check
      _
    $region11: #{tpu_custom_call.1} parent=1 // pred_check_branch
      %38 = sbr.rel (0) target = $region13
    $region12: #{tpu_custom_call.1} parent=1 // pred_region
      _
    $region13: #{tpu_custom_call.1} parent=1 // pred_fallthru
      _
    // Predicated region
    $region14: #{tpu_custom_call.1} parent=1 // pred_check
      _
    $region15: #{tpu_custom_call.1} parent=1 // pred_check_branch
      %40 = sbr.rel (0) target = $region17
    $region16: #{tpu_custom_call.1} parent=1 // pred_region
      %s42 = ssub.s32 512, 512
      %43 = vsyncadd [#allocation7], %s42
      %s44 = sshll.u32 [#allocation8], 4
      %s45 = int_to_ptr.vmem [resolvable:$true] %s44
      %50 = dma.hbm_to_vmem [thread:$0]  %s3, 512, %s45, [#allocation7], 128, 128, 8
    $region17: #{tpu_custom_call.1} parent=1 // pred_fallthru
      _
    // Predicated region
    $region18: #{tpu_custom_call.1} parent=1 // pred_check
      _
    $region19: #{tpu_custom_call.1} parent=1 // pred_check_branch
      %52 = sbr.rel (0) target = $region21
    $region20: #{tpu_custom_call.1} parent=1 // pred_region
      _
    $region21: #{tpu_custom_call.1} parent=1 // pred_fallthru
      _
    // Predicated region
    $region22: #{tpu_custom_call.1} parent=1 // pred_check
      _
    $region23: #{tpu_custom_call.1} parent=1 // pred_check_branch
      %54 = sbr.rel (0) target = $region25
    $region24: #{tpu_custom_call.1} parent=1 // pred_region
      %55 = dma.done [#allocation4], 256
    $region25: #{tpu_custom_call.1} parent=1 // pred_fallthru
      _
    // Predicated region
    $region26: #{tpu_custom_call.1} parent=1 // pred_check
      _
    $region27: #{tpu_custom_call.1} parent=1 // pred_check_branch
      %57 = sbr.rel (0) target = $region29
    $region28: #{tpu_custom_call.1} parent=1 // pred_region
      %58 = dma.done [#allocation7], 512
    $region29: #{tpu_custom_call.1} parent=1 // pred_fallthru
      _
    // Predicated region
    $region30: #{tpu_custom_call.1} parent=1 // pred_check
      _
    $region31: #{tpu_custom_call.1} parent=1 // pred_check_branch
      %60 = sbr.rel (0) target = $region33
    $region32: #{tpu_custom_call.1} parent=1 // pred_region
      %61 = dma.done [#allocation7], 512
    $region33: #{tpu_custom_call.1} parent=1 // pred_fallthru
      _
    %p62 = scmp.eq.s32.totalorder 0, 0
    // Predicated region
    $region34: #{tpu_custom_call.1} parent=1 // pred_check
      %p63 = pneg %p62
    $region35: #{tpu_custom_call.1} parent=1 // pred_check_branch
      %65 = sbr.rel (%p63) target = $region37
    $region36: #{tpu_custom_call.1} parent=1 // pred_region
      %v66 = vld [vmem:[#allocation3] sm:$0xff]
      %v67 = vld [vmem:[#allocation3 + $0x8] sm:$0xff]
      %v68 = vld [vmem:[#allocation6] sm:$0xff]
      %v69 = vld [vmem:[#allocation6 + $0x8] sm:$0xff]
      %v70 = vld [vmem:[#allocation6 + $0x10] sm:$0xff]
      %v71 = vld [vmem:[#allocation6 + $0x18] sm:$0xff]
      %v72 = vld [vmem:[%s2] sm:$0x1]
      %v74 = vlaneseq
      %v75 = vshrl.u32 %v74, 7
      %v76 = vsub.s32 0, %v75
      %v77 = vrot.slane %v72, %v76
      %vm79 = vcmask 261120
      %v81 = vsel %vm79, %v66, 0
      %v84 = vsel %vm79, %v67, 0
      %86 = vmatprep.subr.mxu0 0.0
      %87 = vmatpush1.msra.mxu0 %v68
      %88 = vmatprep.subr.mxu0 0.0
      %89 = vmatpush1.msra.mxu0 %v69
      %90 = vmatprep.subr.mxu0 0.0
      %91 = vmatpush1.msra.mxu0 %v70
      %92 = vmatprep.subr.mxu0 0.0
      %93 = vmatpush1.msra.mxu0 %v71
      %94 = vmatprep.subr.mxu0 0.0
      %95 = vmatpush1.msra.mxu0 0.0
      %96 = vmatprep.subr.mxu0 0.0
      %97 = vmatpush1.msra.mxu0 0.0
      %98 = vmatprep.subr.mxu0 0.0
      %99 = vmatpush1.msra.mxu0 0.0
      %100 = vmatprep.subr.mxu0 0.0
      %101 = vmatpush1.msra.mxu0 0.0
      %102 = vmatprep.subr.mxu0 0.0
      %103 = vmatpush1.msra.mxu0 0.0
      %104 = vmatprep.subr.mxu0 0.0
      %105 = vmatpush1.msra.mxu0 0.0
      %106 = vmatprep.subr.mxu0 0.0
      %107 = vmatpush1.msra.mxu0 0.0
      %108 = vmatprep.subr.mxu0 0.0
      %109 = vmatpush1.msra.mxu0 0.0
      %110 = vmatprep.subr.mxu0 0.0
      %111 = vmatpush1.msra.mxu0 0.0
      %112 = vmatprep.subr.mxu0 0.0
      %113 = vmatpush1.msra.mxu0 0.0
      %114 = vmatprep.subr.mxu0 0.0
      %115 = vmatpush1.msra.mxu0 0.0
      %116 = vmatprep.subr.mxu0 0.0
      %117 = vmatpush1.msra.mxu0 0.0
      %118 = vmatprep.subr.mxu0 0.0
      %119 = vmatpush1.msra.mxu0 0.0
      %120 = vmatprep.subr.mxu0 0.0
      %121 = vmatpush1.msra.mxu0 0.0
      %122 = vmatprep.subr.mxu0 0.0
      %123 = vmatpush1.msra.mxu0 0.0
      %124 = vmatprep.subr.mxu0 0.0
      %125 = vmatpush1.msra.mxu0 0.0
      %126 = vmatprep.subr.mxu0 0.0
      %127 = vmatpush1.msra.mxu0 0.0
      %128 = vmatprep.subr.mxu0 0.0
      %129 = vmatpush1.msra.mxu0 0.0
      %130 = vmatprep.subr.mxu0 0.0
      %131 = vmatpush1.msra.mxu0 0.0
      %132 = vmatprep.subr.mxu0 0.0
      %133 = vmatpush1.msra.mxu0 0.0
      %134 = vmatprep.subr.mxu0 0.0
      %135 = vmatpush1.msra.mxu0 0.0
      %136 = vmatprep.subr.mxu0 0.0
      %137 = vmatpush1.msra.mxu0 0.0
      %138 = vmatprep.subr.mxu0 0.0
      %139 = vmatpush1.msra.mxu0 0.0
      %140 = vmatprep.subr.mxu0 0.0
      %141 = vmatpush1.msra.mxu0 0.0
      %142 = vmatprep.subr.mxu0 0.0
      %143 = vmatpush1.msra.mxu0 0.0
      %144 = vmatprep.subr.mxu0 0.0
      %145 = vmatpush1.msra.mxu0 0.0
      %146 = vmatprep.subr.mxu0 0.0
      %147 = vmatpush1.msra.mxu0 0.0
      %148 = vmatprep.subr.mxu0 0.0
      %149 = vmatpush1.msra.mxu0 0.0
      %150 = vmatprep.mubr.f32.mxu0 0.0
      %151 = vmatmul.mubr.f32.gmra.mrb[0].mxu0 %v81
      %v152 = vpop.f32.mrb[0].mxu0
      %v153 = vadd.f32 %v77, %v152
      %v154 = vpop.f32.mrb[0].mxu0
      %155 = vmatprep.mubr.f32.mxu0 0.0
      %156 = vmatmul.mubr.f32.gmra.mrb[0].mxu0 %v84
      %v157 = vpop.f32.mrb[0].mxu0
      %v158 = vadd.f32 %v77, %v157
      %v159 = vpop.f32.mrb[0].mxu0
      %160 = vdwg.mxu0
      %v161 = vmax.f32 %v153, 0.0
      %v162 = vmax.f32 %v158, 0.0
      %163 = vst.msk [vmem:[#allocation2] sm:$0xff] %vm79, %v161
      %164 = vst.msk [vmem:[#allocation2 + $0x8] sm:$0xff] %vm79, %v162
    $region37: #{tpu_custom_call.1} parent=1 // pred_fallthru
      _
    %v165 = vld [vmem:[#allocation2] sm:$0xff]
    %v166 = vld [vmem:[#allocation2 + $0x8] sm:$0xff]
    %v167 = vld [vmem:[#allocation8] sm:$0xff]
    %v168 = vld [vmem:[#allocation8 + $0x8] sm:$0xff]
    %v169 = vld [vmem:[#allocation8 + $0x10] sm:$0xff]
    %v170 = vld [vmem:[#allocation8 + $0x18] sm:$0xff]
    %v171 = vld [vmem:[%s4] sm:$0x1]
    %v173 = vlaneseq
    %v174 = vshrl.u32 %v173, 7
    %v175 = vsub.s32 0, %v174
    %v176 = vrot.slane %v171, %v175
    %vm178 = vcmask 261120
    %v180 = vsel %vm178, %v165, 0
    %v183 = vsel %vm178, %v166, 0
    %185 = vmatprep.subr.mxu0 0.0
    %186 = vmatpush1.msra.mxu0 %v167
    %187 = vmatprep.subr.mxu0 0.0
    %188 = vmatpush1.msra.mxu0 %v168
    %189 = vmatprep.subr.mxu0 0.0
    %190 = vmatpush1.msra.mxu0 %v169
    %191 = vmatprep.subr.mxu0 0.0
    %192 = vmatpush1.msra.mxu0 %v170
    %193 = vmatprep.subr.mxu0 0.0
    %194 = vmatpush1.msra.mxu0 0.0
    %195 = vmatprep.subr.mxu0 0.0
    %196 = vmatpush1.msra.mxu0 0.0
    %197 = vmatprep.subr.mxu0 0.0
    %198 = vmatpush1.msra.mxu0 0.0
    %199 = vmatprep.subr.mxu0 0.0
    %200 = vmatpush1.msra.mxu0 0.0
    %201 = vmatprep.subr.mxu0 0.0
    %202 = vmatpush1.msra.mxu0 0.0
    %203 = vmatprep.subr.mxu0 0.0
    %204 = vmatpush1.msra.mxu0 0.0
    %205 = vmatprep.subr.mxu0 0.0
    %206 = vmatpush1.msra.mxu0 0.0
    %207 = vmatprep.subr.mxu0 0.0
    %208 = vmatpush1.msra.mxu0 0.0
    %209 = vmatprep.subr.mxu0 0.0
    %210 = vmatpush1.msra.mxu0 0.0
    %211 = vmatprep.subr.mxu0 0.0
    %212 = vmatpush1.msra.mxu0 0.0
    %213 = vmatprep.subr.mxu0 0.0
    %214 = vmatpush1.msra.mxu0 0.0
    %215 = vmatprep.subr.mxu0 0.0
    %216 = vmatpush1.msra.mxu0 0.0
    %217 = vmatprep.subr.mxu0 0.0
    %218 = vmatpush1.msra.mxu0 0.0
    %219 = vmatprep.subr.mxu0 0.0
    %220 = vmatpush1.msra.mxu0 0.0
    %221 = vmatprep.subr.mxu0 0.0
    %222 = vmatpush1.msra.mxu0 0.0
    %223 = vmatprep.subr.mxu0 0.0
    %224 = vmatpush1.msra.mxu0 0.0
    %225 = vmatprep.subr.mxu0 0.0
    %226 = vmatpush1.msra.mxu0 0.0
    %227 = vmatprep.subr.mxu0 0.0
    %228 = vmatpush1.msra.mxu0 0.0
    %229 = vmatprep.subr.mxu0 0.0
    %230 = vmatpush1.msra.mxu0 0.0
    %231 = vmatprep.subr.mxu0 0.0
    %232 = vmatpush1.msra.mxu0 0.0
    %233 = vmatprep.subr.mxu0 0.0
    %234 = vmatpush1.msra.mxu0 0.0
    %235 = vmatprep.subr.mxu0 0.0
    %236 = vmatpush1.msra.mxu0 0.0
    %237 = vmatprep.subr.mxu0 0.0
    %238 = vmatpush1.msra.mxu0 0.0
    %239 = vmatprep.subr.mxu0 0.0
    %240 = vmatpush1.msra.mxu0 0.0
    %241 = vmatprep.subr.mxu0 0.0
    %242 = vmatpush1.msra.mxu0 0.0
    %243 = vmatprep.subr.mxu0 0.0
    %244 = vmatpush1.msra.mxu0 0.0
    %245 = vmatprep.subr.mxu0 0.0
    %246 = vmatpush1.msra.mxu0 0.0
    %247 = vmatprep.subr.mxu0 0.0
    %248 = vmatpush1.msra.mxu0 0.0
    %249 = vmatprep.mubr.f32.mxu0 0.0
    %250 = vmatmul.mubr.f32.gmra.mrb[0].mxu0 %v180
    %v251 = vpop.f32.mrb[0].mxu0
    %v252 = vadd.f32 %v176, %v251
    %v253 = vpop.f32.mrb[0].mxu0
    %254 = vmatprep.mubr.f32.mxu0 0.0
    %255 = vmatmul.mubr.f32.gmra.mrb[0].mxu0 %v183
    %v256 = vpop.f32.mrb[0].mxu0
    %v257 = vadd.f32 %v176, %v256
    %v258 = vpop.f32.mrb[0].mxu0
    %259 = vdwg.mxu0
    %260 = vst [vmem:[#allocation9] sm:$0xff] %v252
    %261 = vst [vmem:[#allocation9 + $0x8] sm:$0xff] %v257
    // Predicated region
    $region38: #{tpu_custom_call.1} parent=1 // pred_check
      _
    $region39: #{tpu_custom_call.1} parent=1 // pred_check_branch
      %263 = sbr.rel (0) target = $region41
    $region40: #{tpu_custom_call.1} parent=1 // pred_region
      %s265 = ssub.s32 256, 256
      %266 = vsyncadd [#allocation5], %s265
      %s267 = sshll.u32 [#allocation9], 4
      %s268 = int_to_ptr.vmem [resolvable:$true] %s267
      %273 = dma.vmem_to_hbm [thread:$0]  %s268, 256, %s5, [#allocation5], 128, 128, 8
    $region41: #{tpu_custom_call.1} parent=1 // pred_fallthru
      _
    // Predicated region
    $region42: #{tpu_custom_call.1} parent=1 // pred_check
      _
    $region43: #{tpu_custom_call.1} parent=1 // pred_check_branch
      %275 = sbr.rel (0) target = $region45
    $region44: #{tpu_custom_call.1} parent=1 // pred_region
      %276 = dma.done [#allocation5], 256
    $region45: #{tpu_custom_call.1} parent=1 // pred_fallthru
      _
    %277 = vsyncpa [#allocation4], 1
    %278 = vsyncpa [#allocation7], 1
    %279 = vsyncpa [#allocation5], 1

// kernel: tpu_custom_call.1
$region0: #{tpu_custom_call.1}
  #allocation0 [shape = 'u32[]', space=smem, size = 0x4, offset = 0x4, fixed_abs, tag = 'smem constant byte address 0x4 - core index']
  #allocation1 [shape = 'u32[144,128]{1,0:T(1,128)}', space=vmem, size = 0x12000, scoped, tag = 'internal scratch']
  #allocation2 [shape = 'f32[16,32]{1,0:T(8,128)}', space=vmem, size = 0x2000, scoped, tag = 'scratch operand']
  %s0 = inlined_call_operand.hbm [shape: f32[16,32], index: 0, kind: input, shape index: {}]
  %s1 = inlined_call_operand.hbm [shape: f32[32,32], index: 1, kind: input, shape index: {}]
  %s2 = inlined_call_operand.vmem [shape: f32[1,32], index: 2, kind: input, shape index: {}]
  %s3 = inlined_call_operand.hbm [shape: f32[32,128], index: 3, kind: input, shape index: {}]
  %s4 = inlined_call_operand.vmem [shape: f32[1,128], index: 4, kind: input, shape index: {}]
  %s5 = inlined_call_operand.hbm [shape: f32[16,128], index: 5, kind: output, shape index: {}]
  %s6 = sld [smem:[#allocation0]]
  $region46: #{tpu_custom_call.1} parent=0
    _
  %s8 = ssub.s32 1, %s6
  %s9 = scalar_select 0, %s8, %s6
  $region1: #{tpu_custom_call.1} parent=0
    #allocation3 [shape = 'u8[8192]{0}', space=vmem, size = 0x2000, scoped, tag = 'input window, operand 0, single buffered']
    #allocation4 [shape = 's32[1]{0}', space=sflag, size = 0x4, scoped, tag = 'scoped memory for tpu_custom_call.1']
    #allocation5 [shape = 's32[1]{0}', space=sflag, size = 0x4, scoped, tag = 'scoped memory for tpu_custom_call.1']
    #allocation6 [shape = 'u8[16384]{0}', space=vmem, size = 0x4000, scoped, tag = 'input window, operand 1, single buffered']
    #allocation7 [shape = 's32[1]{0}', space=sflag, size = 0x4, scoped, tag = 'scoped memory for tpu_custom_call.1']
    #allocation8 [shape = 'u8[16384]{0}', space=vmem, size = 0x4000, scoped, tag = 'input window, operand 3, single buffered']
    #allocation9 [shape = 'u8[8192]{0}', space=vmem, size = 0x2000, scoped, tag = 'output window, operand 0, single buffered']
    %10 = vsyncpa [#allocation4], 0
    %11 = vsyncpa [#allocation7], 0
    %12 = vsyncpa [#allocation5], 0
    // Predicated region
    $region2: #{tpu_custom_call.1} parent=1 // pred_check
      _
    $region3: #{tpu_custom_call.1} parent=1 // pred_check_branch
      %14 = sbr.rel (0) target = $region5
    $region4: #{tpu_custom_call.1} parent=1 // pred_region
      %s16 = ssub.s32 256, 256
      %17 = vsyncadd [#allocation4], %s16
      %s18 = sshll.u32 [#allocation3], 4
      %s19 = int_to_ptr.vmem [resolvable:$true] %s18
      %24 = dma.hbm_to_vmem [thread:$0]  %s0, 256, %s19, [#allocation4], 128, 128, 8
    $region5: #{tpu_custom_call.1} parent=1 // pred_fallthru
      _
    // Predicated region
    $region6: #{tpu_custom_call.1} parent=1 // pred_check
      _
    $region7: #{tpu_custom_call.1} parent=1 // pred_check_branch
      %26 = sbr.rel (0) target = $region9
    $region8: #{tpu_custom_call.1} parent=1 // pred_region
      %s28 = ssub.s32 512, 512
      %29 = vsyncadd [#allocation7], %s28
      %s30 = sshll.u32 [#allocation6], 4
      %s31 = int_to_ptr.vmem [resolvable:$true] %s30
      %36 = dma.hbm_to_vmem [thread:$0]  %s1, 512, %s31, [#allocation7], 128, 128, 8
    $region9: #{tpu_custom_call.1} parent=1 // pred_fallthru
      _
    // Predicated region
    $region10: #{tpu_custom_call.1} parent=1 // pred_check
      _
    $region11: #{tpu_custom_call.1} parent=1 // pred_check_branch
      %38 = sbr.rel (0) target = $region13
    $region12: #{tpu_custom_call.1} parent=1 // pred_region
      _
    $region13: #{tpu_custom_call.1} parent=1 // pred_fallthru
      _
    // Predicated region
    $region14: #{tpu_custom_call.1} parent=1 // pred_check
      _
    $region15: #{tpu_custom_call.1} parent=1 // pred_check_branch
      %40 = sbr.rel (0) target = $region17
    $region16: #{tpu_custom_call.1} parent=1 // pred_region
      %s42 = ssub.s32 512, 512
      %43 = vsyncadd [#allocation7], %s42
      %s44 = sshll.u32 [#allocation8], 4
      %s45 = int_to_ptr.vmem [resolvable:$true] %s44
      %50 = dma.hbm_to_vmem [thread:$0]  %s3, 512, %s45, [#allocation7], 128, 128, 8
    $region17: #{tpu_custom_call.1} parent=1 // pred_fallthru
      _
    // Predicated region
    $region18: #{tpu_custom_call.1} parent=1 // pred_check
      _
    $region19: #{tpu_custom_call.1} parent=1 // pred_check_branch
      %52 = sbr.rel (0) target = $region21
    $region20: #{tpu_custom_call.1} parent=1 // pred_region
      _
    $region21: #{tpu_custom_call.1} parent=1 // pred_fallthru
      _
    // Predicated region
    $region22: #{tpu_custom_call.1} parent=1 // pred_check
      _
    $region23: #{tpu_custom_call.1} parent=1 // pred_check_branch
      %54 = sbr.rel (0) target = $region25
    $region24: #{tpu_custom_call.1} parent=1 // pred_region
      %55 = dma.done [#allocation4], 256
    $region25: #{tpu_custom_call.1} parent=1 // pred_fallthru
      _
    // Predicated region
    $region26: #{tpu_custom_call.1} parent=1 // pred_check
      _
    $region27: #{tpu_custom_call.1} parent=1 // pred_check_branch
      %57 = sbr.rel (0) target = $region29
    $region28: #{tpu_custom_call.1} parent=1 // pred_region
      %58 = dma.done [#allocation7], 512
    $region29: #{tpu_custom_call.1} parent=1 // pred_fallthru
      _
    // Predicated region
    $region30: #{tpu_custom_call.1} parent=1 // pred_check
      _
    $region31: #{tpu_custom_call.1} parent=1 // pred_check_branch
      %60 = sbr.rel (0) target = $region33
    $region32: #{tpu_custom_call.1} parent=1 // pred_region
      %61 = dma.done [#allocation7], 512
    $region33: #{tpu_custom_call.1} parent=1 // pred_fallthru
      _
    %p62 = scmp.eq.s32.totalorder 0, 0
    // Predicated region
    $region34: #{tpu_custom_call.1} parent=1 // pred_check
      %p63 = pneg %p62
    $region35: #{tpu_custom_call.1} parent=1 // pred_check_branch
      %65 = sbr.rel (%p63) target = $region37
    $region36: #{tpu_custom_call.1} parent=1 // pred_region
      %v66 = vld [vmem:[#allocation3] sm:$0xff]
      %v67 = vld [vmem:[#allocation3 + $0x8] sm:$0xff]
      %v68 = vld [vmem:[#allocation6] sm:$0xff]
      %v69 = vld [vmem:[#allocation6 + $0x8] sm:$0xff]
      %v70 = vld [vmem:[#allocation6 + $0x10] sm:$0xff]
      %v71 = vld [vmem:[#allocation6 + $0x18] sm:$0xff]
      %v72 = vld [vmem:[%s2] sm:$0x1]
      %v74 = vlaneseq
      %v75 = vshrl.u32 %v74, 7
      %v76 = vsub.s32 0, %v75
      %v77 = vrot.slane %v72, %v76
      %vm79 = vcmask 261120
      %v81 = vsel %vm79, %v66, 0
      %v84 = vsel %vm79, %v67, 0
      %86 = vmatprep.subr.mxu0 0.0
      %87 = vmatpush1.msra.mxu0 %v68
      %88 = vmatprep.subr.mxu0 0.0
      %89 = vmatpush1.msra.mxu0 %v69
      %90 = vmatprep.subr.mxu0 0.0
      %91 = vmatpush1.msra.mxu0 %v70
      %92 = vmatprep.subr.mxu0 0.0
      %93 = vmatpush1.msra.mxu0 %v71
      %94 = vmatprep.subr.mxu0 0.0
      %95 = vmatpush1.msra.mxu0 0.0
      %96 = vmatprep.subr.mxu0 0.0
      %97 = vmatpush1.msra.mxu0 0.0
      %98 = vmatprep.subr.mxu0 0.0
      %99 = vmatpush1.msra.mxu0 0.0
      %100 = vmatprep.subr.mxu0 0.0
      %101 = vmatpush1.msra.mxu0 0.0
      %102 = vmatprep.subr.mxu0 0.0
      %103 = vmatpush1.msra.mxu0 0.0
      %104 = vmatprep.subr.mxu0 0.0
      %105 = vmatpush1.msra.mxu0 0.0
      %106 = vmatprep.subr.mxu0 0.0
      %107 = vmatpush1.msra.mxu0 0.0
      %108 = vmatprep.subr.mxu0 0.0
      %109 = vmatpush1.msra.mxu0 0.0
      %110 = vmatprep.subr.mxu0 0.0
      %111 = vmatpush1.msra.mxu0 0.0
      %112 = vmatprep.subr.mxu0 0.0
      %113 = vmatpush1.msra.mxu0 0.0
      %114 = vmatprep.subr.mxu0 0.0
      %115 = vmatpush1.msra.mxu0 0.0
      %116 = vmatprep.subr.mxu0 0.0
      %117 = vmatpush1.msra.mxu0 0.0
      %118 = vmatprep.subr.mxu0 0.0
      %119 = vmatpush1.msra.mxu0 0.0
      %120 = vmatprep.subr.mxu0 0.0
      %121 = vmatpush1.msra.mxu0 0.0
      %122 = vmatprep.subr.mxu0 0.0
      %123 = vmatpush1.msra.mxu0 0.0
      %124 = vmatprep.subr.mxu0 0.0
      %125 = vmatpush1.msra.mxu0 0.0
      %126 = vmatprep.subr.mxu0 0.0
      %127 = vmatpush1.msra.mxu0 0.0
      %128 = vmatprep.subr.mxu0 0.0
      %129 = vmatpush1.msra.mxu0 0.0
      %130 = vmatprep.subr.mxu0 0.0
      %131 = vmatpush1.msra.mxu0 0.0
      %132 = vmatprep.subr.mxu0 0.0
      %133 = vmatpush1.msra.mxu0 0.0
      %134 = vmatprep.subr.mxu0 0.0
      %135 = vmatpush1.msra.mxu0 0.0
      %136 = vmatprep.subr.mxu0 0.0
      %137 = vmatpush1.msra.mxu0 0.0
      %138 = vmatprep.subr.mxu0 0.0
      %139 = vmatpush1.msra.mxu0 0.0
      %140 = vmatprep.subr.mxu0 0.0
      %141 = vmatpush1.msra.mxu0 0.0
      %142 = vmatprep.subr.mxu0 0.0
      %143 = vmatpush1.msra.mxu0 0.0
      %144 = vmatprep.subr.mxu0 0.0
      %145 = vmatpush1.msra.mxu0 0.0
      %146 = vmatprep.subr.mxu0 0.0
      %147 = vmatpush1.msra.mxu0 0.0
      %148 = vmatprep.subr.mxu0 0.0
      %149 = vmatpush1.msra.mxu0 0.0
      %150 = vmatprep.mubr.f32.mxu0 0.0
      %151 = vmatmul.mubr.f32.gmra.mrb[0].mxu0 %v81
      %v152 = vpop.f32.mrb[0].mxu0
      %v153 = vadd.f32 %v77, %v152
      %v154 = vpop.f32.mrb[0].mxu0
      %155 = vmatprep.mubr.f32.mxu0 0.0
      %156 = vmatmul.mubr.f32.gmra.mrb[0].mxu0 %v84
      %v157 = vpop.f32.mrb[0].mxu0
      %v158 = vadd.f32 %v77, %v157
      %v159 = vpop.f32.mrb[0].mxu0
      %160 = vdwg.mxu0
      %v161 = vmax.f32 %v153, 0.0
      %v162 = vmax.f32 %v158, 0.0
      %163 = vst.msk [vmem:[#allocation2] sm:$0xff] %vm79, %v161
      %164 = vst.msk [vmem:[#allocation2 + $0x8] sm:$0xff] %vm79, %v162
    $region37: #{tpu_custom_call.1} parent=1 // pred_fallthru
      _
    %v165 = vld [vmem:[#allocation2] sm:$0xff]
    %v166 = vld [vmem:[#allocation2 + $0x8] sm:$0xff]
    %v167 = vld [vmem:[#allocation8] sm:$0xff]
    %v168 = vld [vmem:[#allocation8 + $0x8] sm:$0xff]
    %v169 = vld [vmem:[#allocation8 + $0x10] sm:$0xff]
    %v170 = vld [vmem:[#allocation8 + $0x18] sm:$0xff]
    %v171 = vld [vmem:[%s4] sm:$0x1]
    %v173 = vlaneseq
    %v174 = vshrl.u32 %v173, 7
    %v175 = vsub.s32 0, %v174
    %v176 = vrot.slane %v171, %v175
    %vm178 = vcmask 261120
    %v180 = vsel %vm178, %v165, 0
    %v183 = vsel %vm178, %v166, 0
    %185 = vmatprep.subr.mxu0 0.0
    %186 = vmatpush1.msra.mxu0 %v167
    %187 = vmatprep.subr.mxu0 0.0
    %188 = vmatpush1.msra.mxu0 %v168
    %189 = vmatprep.subr.mxu0 0.0
    %190 = vmatpush1.msra.mxu0 %v169
    %191 = vmatprep.subr.mxu0 0.0
    %192 = vmatpush1.msra.mxu0 %v170
    %193 = vmatprep.subr.mxu0 0.0
    %194 = vmatpush1.msra.mxu0 0.0
    %195 = vmatprep.subr.mxu0 0.0
    %196 = vmatpush1.msra.mxu0 0.0
    %197 = vmatprep.subr.mxu0 0.0
    %198 = vmatpush1.msra.mxu0 0.0
    %199 = vmatprep.subr.mxu0 0.0
    %200 = vmatpush1.msra.mxu0 0.0
    %201 = vmatprep.subr.mxu0 0.0
    %202 = vmatpush1.msra.mxu0 0.0
    %203 = vmatprep.subr.mxu0 0.0
    %204 = vmatpush1.msra.mxu0 0.0
    %205 = vmatprep.subr.mxu0 0.0
    %206 = vmatpush1.msra.mxu0 0.0
    %207 = vmatprep.subr.mxu0 0.0
    %208 = vmatpush1.msra.mxu0 0.0
    %209 = vmatprep.subr.mxu0 0.0
    %210 = vmatpush1.msra.mxu0 0.0
    %211 = vmatprep.subr.mxu0 0.0
    %212 = vmatpush1.msra.mxu0 0.0
    %213 = vmatprep.subr.mxu0 0.0
    %214 = vmatpush1.msra.mxu0 0.0
    %215 = vmatprep.subr.mxu0 0.0
    %216 = vmatpush1.msra.mxu0 0.0
    %217 = vmatprep.subr.mxu0 0.0
    %218 = vmatpush1.msra.mxu0 0.0
    %219 = vmatprep.subr.mxu0 0.0
    %220 = vmatpush1.msra.mxu0 0.0
    %221 = vmatprep.subr.mxu0 0.0
    %222 = vmatpush1.msra.mxu0 0.0
    %223 = vmatprep.subr.mxu0 0.0
    %224 = vmatpush1.msra.mxu0 0.0
    %225 = vmatprep.subr.mxu0 0.0
    %226 = vmatpush1.msra.mxu0 0.0
    %227 = vmatprep.subr.mxu0 0.0
    %228 = vmatpush1.msra.mxu0 0.0
    %229 = vmatprep.subr.mxu0 0.0
    %230 = vmatpush1.msra.mxu0 0.0
    %231 = vmatprep.subr.mxu0 0.0
    %232 = vmatpush1.msra.mxu0 0.0
    %233 = vmatprep.subr.mxu0 0.0
    %234 = vmatpush1.msra.mxu0 0.0
    %235 = vmatprep.subr.mxu0 0.0
    %236 = vmatpush1.msra.mxu0 0.0
    %237 = vmatprep.subr.mxu0 0.0
    %238 = vmatpush1.msra.mxu0 0.0
    %239 = vmatprep.subr.mxu0 0.0
    %240 = vmatpush1.msra.mxu0 0.0
    %241 = vmatprep.subr.mxu0 0.0
    %242 = vmatpush1.msra.mxu0 0.0
    %243 = vmatprep.subr.mxu0 0.0
    %244 = vmatpush1.msra.mxu0 0.0
    %245 = vmatprep.subr.mxu0 0.0
    %246 = vmatpush1.msra.mxu0 0.0
    %247 = vmatprep.subr.mxu0 0.0
    %248 = vmatpush1.msra.mxu0 0.0
    %249 = vmatprep.mubr.f32.mxu0 0.0
    %250 = vmatmul.mubr.f32.gmra.mrb[0].mxu0 %v180
    %v251 = vpop.f32.mrb[0].mxu0
    %v252 = vadd.f32 %v176, %v251
    %v253 = vpop.f32.mrb[0].mxu0
    %254 = vmatprep.mubr.f32.mxu0 0.0
    %255 = vmatmul.mubr.f32.gmra.mrb[0].mxu0 %v183
    %v256 = vpop.f32.mrb[0].mxu0
    %v257 = vadd.f32 %v176, %v256
    %v258 = vpop.f32.mrb[0].mxu0
    %259 = vdwg.mxu0
    %260 = vst [vmem:[#allocation9] sm:$0xff] %v252
    %261 = vst [vmem:[#allocation9 + $0x8] sm:$0xff] %v257
    // Predicated region
    $region38: #{tpu_custom_call.1} parent=1 // pred_check
      _
    $region39: #{tpu_custom_call.1} parent=1 // pred_check_branch
      %263 = sbr.rel (0) target = $region41
    $region40: #{tpu_custom_call.1} parent=1 // pred_region
      %s265 = ssub.s32 256, 256
      %266 = vsyncadd [#allocation5], %s265
      %s267 = sshll.u32 [#allocation9], 4
      %s268 = int_to_ptr.vmem [resolvable:$true] %s267
      %273 = dma.vmem_to_hbm [thread:$0]  %s268, 256, %s5, [#allocation5], 128, 128, 8
    $region41: #{tpu_custom_call.1} parent=1 // pred_fallthru
      _
    // Predicated region
    $region42: #{tpu_custom_call.1} parent=1 // pred_check
      _
    $region43: #{tpu_custom_call.1} parent=1 // pred_check_branch
      %275 = sbr.rel (0) target = $region45
    $region44: #{tpu_custom_call.1} parent=1 // pred_region
      %276 = dma.done [#allocation5], 256
    $region45: #{tpu_custom_call.1} parent=1 // pred_fallthru
      _
    %277 = vsyncpa [#allocation4], 1
    %278 = vsyncpa [#allocation7], 1
    %279 = vsyncpa [#allocation5], 1

</llo_original>
